<compile_context>
chip_gen: v5e
topology: v5e:2x2
jax: 0.10.0
libtpu: 0.0.40
codegen_flags: <defaults>
</compile_context>

<pallas_src>
import jax
import jax.numpy as jnp
from jax import lax
from jax.experimental import pallas as pl
from jax.experimental.pallas import tpu as pltpu

# ----- model dimensions (small, consistent with the module) ---------------
C_IN, MID, OUT, K = 1, 8, 1, 3      # in_channels, mid_channels, out_channels, kernel_size
T_EMBED = 128                       # time_embed_dim (lane-aligned stand-in for 512)
L = 256                             # sample length (multiple of 128 lanes)
N = 16                              # batch
NEG_SLOPE = 0.1                     # LeakyReLU(0.1)


def convblockres_kernel(x_ref, te_ref, wl_ref, w1_ref, b1_ref, bl_ref,
                        w2_ref, b2_ref, o_ref):
    x = x_ref[...]                       # (B, L)        batch on sublanes, length on lanes
    te = te_ref[...]                     # (B, T_EMBED)  lane-dense time-embedding rows
    wl = wl_ref[...]                     # (MID, T_EMBED) lane-dense linear weight

    b, l = x.shape
    lane = lax.broadcasted_iota(jnp.int32, (b, l), 1)
    not_first = lane != 0                # the [l-1] tap is zero-padded at l == 0
    not_last = lane != (l - 1)           # the [l+1] tap is zero-padded at l == L-1

    # in_conv taps of x, built once: (x[l-1], x[l], x[l+1]) with Conv1d(pad=1)
    # zero padding.  pltpu.roll runs in the XLU slot; wrapped lanes are masked.
    x_m1 = jnp.where(not_first, pltpu.roll(x, 1, axis=1), 0.0)
    x_p1 = jnp.where(not_last, pltpu.roll(x, l - 1, axis=1), 0.0)
    x_taps = (x_m1, x, x_p1)

    # Time-embedding Linear hoisted out of the channel loop: one small MXU
    # matmul  t[b, m] = sum_e te[b, e] * wl[m, e]   -> shape (B, MID).
    t = lax.dot_general(te, wl, dimension_numbers=(((1,), (1,)), ((), ())),
                        preferred_element_type=jnp.float32)

    # out_conv factored by tap: s_m1 / s_0 / s_p1 collect the channel-summed
    # contributions that feed the l-1 / l / l+1 taps; only 2 rolls + 2 masks
    # total are needed after the loop (instead of 2 per channel).
    s_m1 = jnp.zeros((b, l), jnp.float32)
    s_0 = jnp.zeros((b, l), jnp.float32)
    s_p1 = jnp.zeros((b, l), jnp.float32)

    for m in range(MID):
        # ---- in_conv channel m: pure VPU broadcast-MACs with SMEM scalars ----
        hm = (x_taps[0] * w1_ref[m * K + 0]
              + x_taps[1] * w1_ref[m * K + 1]
              + x_taps[2] * w1_ref[m * K + 2]
              + b1_ref[m])

        # ---- LeakyReLU(0.1): mul + max ----
        hm = jnp.maximum(hm, NEG_SLOPE * hm)

        # ---- add time-embedding channel m (broadcast over the lane axis) ----
        hm = hm + (t[:, m:m + 1] + bl_ref[m])

        # ---- out_conv contribution of channel m, factored per tap ----
        s_m1 = s_m1 + w2_ref[m * K + 0] * hm
        s_0 = s_0 + w2_ref[m * K + 1] * hm
        s_p1 = s_p1 + w2_ref[m * K + 2] * hm

    # Apply the k=3 shifts once, add the out_conv bias once at the store.
    out = (s_0
           + jnp.where(not_first, pltpu.roll(s_m1, 1, axis=1), 0.0)
           + jnp.where(not_last, pltpu.roll(s_p1, l - 1, axis=1), 0.0)
           + b2_ref[0])

    # res == 'same' -> Identity
    o_ref[...] = out.astype(o_ref.dtype)


def conv_block_res(x, time_embed, params, *, block_b=None):
    """x: (N, C_IN, L) f32;  time_embed: (N, T_EMBED) f32."""
    w1, b1, wl, bl, w2, b2 = params
    n, c_in, l = x.shape
    assert c_in == C_IN == 1 and OUT == 1
    assert l % 128 == 0, "length must be lane-aligned"

    if block_b is None:
        # Single grid step: v5e/v6e are single-TensorCore, so extra grid steps
        # only add fixed per-step overhead.  On v7x, A/B block_b = n // 2.
        block_b = n
    assert n % block_b == 0 and block_b % 8 == 0, \
        "batch block must be sublane-aligned and divide the batch"
    # TODO(synk): general batch sizes need pl.cdiv + a tail mask.

    x2 = x.reshape(n, l)                         # drop the size-1 channel dim
    w1_flat = w1.reshape(MID * C_IN * K)         # index m*K + k  (C_IN == 1)
    w2_flat = w2.reshape(OUT * MID * K)          # index m*K + k  (OUT == 1)

    smem = pl.BlockSpec(memory_space=pltpu.MemorySpace.SMEM)
    grid_spec = pltpu.PrefetchScalarGridSpec(
        num_scalar_prefetch=0,
        grid=(n // block_b,),
        in_specs=[
            pl.BlockSpec((block_b, l), lambda i: (i, 0)),        # x        (sublane-dense)
            pl.BlockSpec((block_b, T_EMBED), lambda i: (i, 0)),  # te rows  (lane-dense)
            pl.BlockSpec((MID, T_EMBED), lambda i: (0, 0)),      # wl       (lane-dense)
            smem,                                                # w1 taps  (24 scalars)
            smem,                                                # b1       (8 scalars)
            smem,                                                # bl       (8 scalars)
            smem,                                                # w2 taps  (24 scalars)
            smem,                                                # b2       (1 scalar)
        ],
        out_specs=pl.BlockSpec((block_b, l), lambda i: (i, 0)),
    )
    y2 = pl.pallas_call(
        convblockres_kernel,
        out_shape=jax.ShapeDtypeStruct((n, l), x.dtype),
        grid_spec=grid_spec,
        compiler_params=pltpu.CompilerParams(dimension_semantics=("parallel",)),
    )(x2, time_embed, wl, w1_flat, b1, bl, w2_flat, b2)
    return y2.reshape(n, OUT, l)


def ref_forward(x, te, w1, b1, wl, bl, w2, b2):
    """Pure-JAX reference mirroring the PyTorch forward."""
    dn = ('NCH', 'OIH', 'NCH')
    h = lax.conv_general_dilated(x, w1, (1,), [(1, 1)], dimension_numbers=dn,
                                 precision=lax.Precision.HIGHEST)
    h = h + b1[None, :, None]
    h = jnp.where(h > 0, h, NEG_SLOPE * h)
    t = jnp.einsum('ne,me->nm', te, wl, precision=lax.Precision.HIGHEST) + bl
    h = h + t[:, :, None]
    y = lax.conv_general_dilated(h, w2, (1,), [(1, 1)], dimension_numbers=dn,
                                 precision=lax.Precision.HIGHEST)
    y = y + b2[None, :, None]
    return y


if __name__ == "__main__":
    key = jax.random.PRNGKey(0)
    ks = jax.random.split(key, 8)

    x = jax.random.normal(ks[0], (N, C_IN, L), jnp.float32)
    time_embed = jax.random.normal(ks[1], (N, T_EMBED), jnp.float32)

    # Deterministic parameter init (kaiming-normal-style scaling for weights).
    w1 = jax.random.normal(ks[2], (MID, C_IN, K), jnp.float32) * jnp.sqrt(2.0 / (C_IN * K))
    b1 = jax.random.normal(ks[3], (MID,), jnp.float32) * 0.05
    wl = jax.random.normal(ks[4], (MID, T_EMBED), jnp.float32) * jnp.sqrt(1.0 / T_EMBED)
    bl = jax.random.normal(ks[5], (MID,), jnp.float32) * 0.05
    w2 = jax.random.normal(ks[6], (OUT, MID, K), jnp.float32) * jnp.sqrt(2.0 / (MID * K))
    b2 = jax.random.normal(ks[7], (OUT,), jnp.float32) * 0.05

    params = (w1, b1, wl, bl, w2, b2)

    y = conv_block_res(x, time_embed, params)
    y = jax.block_until_ready(y)

    y_ref = ref_forward(x, time_embed, w1, b1, wl, bl, w2, b2)
    assert y.shape == (N, OUT, L)
    # Accumulation order and MXU dot differ from the HIGHEST-precision
    # reference, so agreement is to ~1e-3, not bit-exact.
    assert jnp.allclose(y, y_ref, atol=2e-3, rtol=2e-3), "mismatch vs reference"

    print("KERNEL_OK")
</pallas_src>

<mosaic_0001>
module attributes {stable_mosaic.version = 11 : i64} {
  func.func @convblockres_kernel(%arg0: i32, %arg1: memref<16x256xf32, #tpu.memory_space<vmem>>, %arg2: memref<16x128xf32, #tpu.memory_space<vmem>>, %arg3: memref<8x128xf32, #tpu.memory_space<vmem>>, %arg4: memref<24xf32, #tpu.memory_space<smem>>, %arg5: memref<8xf32, #tpu.memory_space<smem>>, %arg6: memref<8xf32, #tpu.memory_space<smem>>, %arg7: memref<24xf32, #tpu.memory_space<smem>>, %arg8: memref<1xf32, #tpu.memory_space<smem>>, %arg9: memref<16x256xf32, #tpu.memory_space<vmem>>) attributes {dimension_semantics = [#tpu.dimension_semantics<parallel>], iteration_bounds = array<i64: 1>, scalar_prefetch = 0 : i64, scratch_operands = 0 : i64, tpu.core_type = #tpu.core_type<tc>, window_params = [{transform_indices = @transform_0, window_bounds = array<i64: 16, 256>}, {transform_indices = @transform_1, window_bounds = array<i64: 16, 128>}, {pipeline_mode = #tpu.pipeline_mode<synchronous>, transform_indices = @transform_2, window_bounds = array<i64: 8, 128>}, {transform_indices = @transform_3, window_bounds = array<i64: 24>}, {transform_indices = @transform_4, window_bounds = array<i64: 8>}, {transform_indices = @transform_5, window_bounds = array<i64: 8>}, {transform_indices = @transform_6, window_bounds = array<i64: 24>}, {transform_indices = @transform_7, window_bounds = array<i64: 1>}, {transform_indices = @transform_8, window_bounds = array<i64: 16, 256>}]} {
    %c0 = arith.constant 0 : index
    %c0_0 = arith.constant 0 : index
    %0 = vector.load %arg1[%c0, %c0_0] : memref<16x256xf32, #tpu.memory_space<vmem>>, vector<16x256xf32>
    %c0_1 = arith.constant 0 : index
    %c0_2 = arith.constant 0 : index
    %1 = vector.load %arg2[%c0_1, %c0_2] : memref<16x128xf32, #tpu.memory_space<vmem>>, vector<16x128xf32>
    %c0_3 = arith.constant 0 : index
    %c0_4 = arith.constant 0 : index
    %2 = vector.load %arg3[%c0_3, %c0_4] : memref<8x128xf32, #tpu.memory_space<vmem>>, vector<8x128xf32>
    %3 = tpu.iota {dimensions = array<i32: 1>} : vector<16x256xi32>
    %c0_i32 = arith.constant 0 : i32
    %4 = vector.broadcast %c0_i32 : i32 to vector<16x256xi32>
    %5 = arith.cmpi ne, %3, %4 : vector<16x256xi32>
    %c255_i32 = arith.constant 255 : i32
    %6 = vector.broadcast %c255_i32 : i32 to vector<16x256xi32>
    %7 = arith.cmpi ne, %3, %6 : vector<16x256xi32>
    %c1_i32 = arith.constant 1 : i32
    %8 = tpu.dynamic_rotate %0 by %c1_i32 dim 1 : vector<16x256xf32>, i32 -> vector<16x256xf32>
    %cst = arith.constant 0.000000e+00 : f32
    %9 = vector.broadcast %cst : f32 to vector<16x256xf32>
    %10 = arith.select %5, %8, %9 : vector<16x256xi1>, vector<16x256xf32>
    %c255_i32_5 = arith.constant 255 : i32
    %11 = tpu.dynamic_rotate %0 by %c255_i32_5 dim 1 : vector<16x256xf32>, i32 -> vector<16x256xf32>
    %cst_6 = arith.constant 0.000000e+00 : f32
    %12 = vector.broadcast %cst_6 : f32 to vector<16x256xf32>
    %13 = arith.select %7, %11, %12 : vector<16x256xi1>, vector<16x256xf32>
    %cst_7 = arith.constant dense<0.000000e+00> : vector<16x8xf32>
    %14 = tpu.matmul %1, %2, %cst_7 {dimension_numbers = #tpu.dot_dimension_numbers<[1], [1], [0], [0], [0, 0, 1, 0], [], []>} : vector<16x128xf32>, vector<8x128xf32>, vector<16x8xf32> -> vector<16x8xf32>
    %cst_8 = arith.constant 0.000000e+00 : f32
    %15 = vector.broadcast %cst_8 : f32 to vector<16x256xf32>
    %cst_9 = arith.constant 0.000000e+00 : f32
    %16 = vector.broadcast %cst_9 : f32 to vector<16x256xf32>
    %cst_10 = arith.constant 0.000000e+00 : f32
    %17 = vector.broadcast %cst_10 : f32 to vector<16x256xf32>
    %c0_11 = arith.constant 0 : index
    %18 = memref.load %arg4[%c0_11] : memref<24xf32, #tpu.memory_space<smem>>
    %19 = vector.broadcast %18 : f32 to vector<16x256xf32>
    %20 = arith.mulf %10, %19 : vector<16x256xf32>
    %c1 = arith.constant 1 : index
    %21 = memref.load %arg4[%c1] : memref<24xf32, #tpu.memory_space<smem>>
    %22 = vector.broadcast %21 : f32 to vector<16x256xf32>
    %23 = arith.mulf %0, %22 : vector<16x256xf32>
    %24 = arith.addf %20, %23 : vector<16x256xf32>
    %c2 = arith.constant 2 : index
    %25 = memref.load %arg4[%c2] : memref<24xf32, #tpu.memory_space<smem>>
    %26 = vector.broadcast %25 : f32 to vector<16x256xf32>
    %27 = arith.mulf %13, %26 : vector<16x256xf32>
    %28 = arith.addf %24, %27 : vector<16x256xf32>
    %c0_12 = arith.constant 0 : index
    %29 = memref.load %arg5[%c0_12] : memref<8xf32, #tpu.memory_space<smem>>
    %30 = vector.broadcast %29 : f32 to vector<16x256xf32>
    %31 = arith.addf %28, %30 : vector<16x256xf32>
    %cst_13 = arith.constant 1.000000e-01 : f32
    %32 = vector.broadcast %cst_13 : f32 to vector<16x256xf32>
    %33 = arith.mulf %32, %31 : vector<16x256xf32>
    %34 = arith.maximumf %31, %33 : vector<16x256xf32>
    %35 = vector.extract_strided_slice %14 {offsets = [0, 0], sizes = [16, 1], strides = [1, 1]} : vector<16x8xf32> to vector<16x1xf32>
    %c0_14 = arith.constant 0 : index
    %36 = memref.load %arg6[%c0_14] : memref<8xf32, #tpu.memory_space<smem>>
    %37 = vector.broadcast %36 : f32 to vector<16x1xf32>
    %38 = arith.addf %35, %37 : vector<16x1xf32>
    %39 = vector.broadcast %38 : vector<16x1xf32> to vector<16x256xf32>
    %40 = arith.addf %34, %39 : vector<16x256xf32>
    %c0_15 = arith.constant 0 : index
    %41 = memref.load %arg7[%c0_15] : memref<24xf32, #tpu.memory_space<smem>>
    %42 = vector.broadcast %41 : f32 to vector<16x256xf32>
    %43 = arith.mulf %42, %40 : vector<16x256xf32>
    %44 = arith.addf %15, %43 : vector<16x256xf32>
    %c1_16 = arith.constant 1 : index
    %45 = memref.load %arg7[%c1_16] : memref<24xf32, #tpu.memory_space<smem>>
    %46 = vector.broadcast %45 : f32 to vector<16x256xf32>
    %47 = arith.mulf %46, %40 : vector<16x256xf32>
    %48 = arith.addf %16, %47 : vector<16x256xf32>
    %c2_17 = arith.constant 2 : index
    %49 = memref.load %arg7[%c2_17] : memref<24xf32, #tpu.memory_space<smem>>
    %50 = vector.broadcast %49 : f32 to vector<16x256xf32>
    %51 = arith.mulf %50, %40 : vector<16x256xf32>
    %52 = arith.addf %17, %51 : vector<16x256xf32>
    %c3 = arith.constant 3 : index
    %53 = memref.load %arg4[%c3] : memref<24xf32, #tpu.memory_space<smem>>
    %54 = vector.broadcast %53 : f32 to vector<16x256xf32>
    %55 = arith.mulf %10, %54 : vector<16x256xf32>
    %c4 = arith.constant 4 : index
    %56 = memref.load %arg4[%c4] : memref<24xf32, #tpu.memory_space<smem>>
    %57 = vector.broadcast %56 : f32 to vector<16x256xf32>
    %58 = arith.mulf %0, %57 : vector<16x256xf32>
    %59 = arith.addf %55, %58 : vector<16x256xf32>
    %c5 = arith.constant 5 : index
    %60 = memref.load %arg4[%c5] : memref<24xf32, #tpu.memory_space<smem>>
    %61 = vector.broadcast %60 : f32 to vector<16x256xf32>
    %62 = arith.mulf %13, %61 : vector<16x256xf32>
    %63 = arith.addf %59, %62 : vector<16x256xf32>
    %c1_18 = arith.constant 1 : index
    %64 = memref.load %arg5[%c1_18] : memref<8xf32, #tpu.memory_space<smem>>
    %65 = vector.broadcast %64 : f32 to vector<16x256xf32>
    %66 = arith.addf %63, %65 : vector<16x256xf32>
    %cst_19 = arith.constant 1.000000e-01 : f32
    %67 = vector.broadcast %cst_19 : f32 to vector<16x256xf32>
    %68 = arith.mulf %67, %66 : vector<16x256xf32>
    %69 = arith.maximumf %66, %68 : vector<16x256xf32>
    %70 = vector.extract_strided_slice %14 {offsets = [0, 1], sizes = [16, 1], strides = [1, 1]} : vector<16x8xf32> to vector<16x1xf32>
    %c1_20 = arith.constant 1 : index
    %71 = memref.load %arg6[%c1_20] : memref<8xf32, #tpu.memory_space<smem>>
    %72 = vector.broadcast %71 : f32 to vector<16x1xf32>
    %73 = arith.addf %70, %72 : vector<16x1xf32>
    %74 = vector.broadcast %73 : vector<16x1xf32> to vector<16x256xf32>
    %75 = arith.addf %69, %74 : vector<16x256xf32>
    %c3_21 = arith.constant 3 : index
    %76 = memref.load %arg7[%c3_21] : memref<24xf32, #tpu.memory_space<smem>>
    %77 = vector.broadcast %76 : f32 to vector<16x256xf32>
    %78 = arith.mulf %77, %75 : vector<16x256xf32>
    %79 = arith.addf %44, %78 : vector<16x256xf32>
    %c4_22 = arith.constant 4 : index
    %80 = memref.load %arg7[%c4_22] : memref<24xf32, #tpu.memory_space<smem>>
    %81 = vector.broadcast %80 : f32 to vector<16x256xf32>
    %82 = arith.mulf %81, %75 : vector<16x256xf32>
    %83 = arith.addf %48, %82 : vector<16x256xf32>
    %c5_23 = arith.constant 5 : index
    %84 = memref.load %arg7[%c5_23] : memref<24xf32, #tpu.memory_space<smem>>
    %85 = vector.broadcast %84 : f32 to vector<16x256xf32>
    %86 = arith.mulf %85, %75 : vector<16x256xf32>
    %87 = arith.addf %52, %86 : vector<16x256xf32>
    %c6 = arith.constant 6 : index
    %88 = memref.load %arg4[%c6] : memref<24xf32, #tpu.memory_space<smem>>
    %89 = vector.broadcast %88 : f32 to vector<16x256xf32>
    %90 = arith.mulf %10, %89 : vector<16x256xf32>
    %c7 = arith.constant 7 : index
    %91 = memref.load %arg4[%c7] : memref<24xf32, #tpu.memory_space<smem>>
    %92 = vector.broadcast %91 : f32 to vector<16x256xf32>
    %93 = arith.mulf %0, %92 : vector<16x256xf32>
    %94 = arith.addf %90, %93 : vector<16x256xf32>
    %c8 = arith.constant 8 : index
    %95 = memref.load %arg4[%c8] : memref<24xf32, #tpu.memory_space<smem>>
    %96 = vector.broadcast %95 : f32 to vector<16x256xf32>
    %97 = arith.mulf %13, %96 : vector<16x256xf32>
    %98 = arith.addf %94, %97 : vector<16x256xf32>
    %c2_24 = arith.constant 2 : index
    %99 = memref.load %arg5[%c2_24] : memref<8xf32, #tpu.memory_space<smem>>
    %100 = vector.broadcast %99 : f32 to vector<16x256xf32>
    %101 = arith.addf %98, %100 : vector<16x256xf32>
    %cst_25 = arith.constant 1.000000e-01 : f32
    %102 = vector.broadcast %cst_25 : f32 to vector<16x256xf32>
    %103 = arith.mulf %102, %101 : vector<16x256xf32>
    %104 = arith.maximumf %101, %103 : vector<16x256xf32>
    %105 = vector.extract_strided_slice %14 {offsets = [0, 2], sizes = [16, 1], strides = [1, 1]} : vector<16x8xf32> to vector<16x1xf32>
    %c2_26 = arith.constant 2 : index
    %106 = memref.load %arg6[%c2_26] : memref<8xf32, #tpu.memory_space<smem>>
    %107 = vector.broadcast %106 : f32 to vector<16x1xf32>
    %108 = arith.addf %105, %107 : vector<16x1xf32>
    %109 = vector.broadcast %108 : vector<16x1xf32> to vector<16x256xf32>
    %110 = arith.addf %104, %109 : vector<16x256xf32>
    %c6_27 = arith.constant 6 : index
    %111 = memref.load %arg7[%c6_27] : memref<24xf32, #tpu.memory_space<smem>>
    %112 = vector.broadcast %111 : f32 to vector<16x256xf32>
    %113 = arith.mulf %112, %110 : vector<16x256xf32>
    %114 = arith.addf %79, %113 : vector<16x256xf32>
    %c7_28 = arith.constant 7 : index
    %115 = memref.load %arg7[%c7_28] : memref<24xf32, #tpu.memory_space<smem>>
    %116 = vector.broadcast %115 : f32 to vector<16x256xf32>
    %117 = arith.mulf %116, %110 : vector<16x256xf32>
    %118 = arith.addf %83, %117 : vector<16x256xf32>
    %c8_29 = arith.constant 8 : index
    %119 = memref.load %arg7[%c8_29] : memref<24xf32, #tpu.memory_space<smem>>
    %120 = vector.broadcast %119 : f32 to vector<16x256xf32>
    %121 = arith.mulf %120, %110 : vector<16x256xf32>
    %122 = arith.addf %87, %121 : vector<16x256xf32>
    %c9 = arith.constant 9 : index
    %123 = memref.load %arg4[%c9] : memref<24xf32, #tpu.memory_space<smem>>
    %124 = vector.broadcast %123 : f32 to vector<16x256xf32>
    %125 = arith.mulf %10, %124 : vector<16x256xf32>
    %c10 = arith.constant 10 : index
    %126 = memref.load %arg4[%c10] : memref<24xf32, #tpu.memory_space<smem>>
    %127 = vector.broadcast %126 : f32 to vector<16x256xf32>
    %128 = arith.mulf %0, %127 : vector<16x256xf32>
    %129 = arith.addf %125, %128 : vector<16x256xf32>
    %c11 = arith.constant 11 : index
    %130 = memref.load %arg4[%c11] : memref<24xf32, #tpu.memory_space<smem>>
    %131 = vector.broadcast %130 : f32 to vector<16x256xf32>
    %132 = arith.mulf %13, %131 : vector<16x256xf32>
    %133 = arith.addf %129, %132 : vector<16x256xf32>
    %c3_30 = arith.constant 3 : index
    %134 = memref.load %arg5[%c3_30] : memref<8xf32, #tpu.memory_space<smem>>
    %135 = vector.broadcast %134 : f32 to vector<16x256xf32>
    %136 = arith.addf %133, %135 : vector<16x256xf32>
    %cst_31 = arith.constant 1.000000e-01 : f32
    %137 = vector.broadcast %cst_31 : f32 to vector<16x256xf32>
    %138 = arith.mulf %137, %136 : vector<16x256xf32>
    %139 = arith.maximumf %136, %138 : vector<16x256xf32>
    %140 = vector.extract_strided_slice %14 {offsets = [0, 3], sizes = [16, 1], strides = [1, 1]} : vector<16x8xf32> to vector<16x1xf32>
    %c3_32 = arith.constant 3 : index
    %141 = memref.load %arg6[%c3_32] : memref<8xf32, #tpu.memory_space<smem>>
    %142 = vector.broadcast %141 : f32 to vector<16x1xf32>
    %143 = arith.addf %140, %142 : vector<16x1xf32>
    %144 = vector.broadcast %143 : vector<16x1xf32> to vector<16x256xf32>
    %145 = arith.addf %139, %144 : vector<16x256xf32>
    %c9_33 = arith.constant 9 : index
    %146 = memref.load %arg7[%c9_33] : memref<24xf32, #tpu.memory_space<smem>>
    %147 = vector.broadcast %146 : f32 to vector<16x256xf32>
    %148 = arith.mulf %147, %145 : vector<16x256xf32>
    %149 = arith.addf %114, %148 : vector<16x256xf32>
    %c10_34 = arith.constant 10 : index
    %150 = memref.load %arg7[%c10_34] : memref<24xf32, #tpu.memory_space<smem>>
    %151 = vector.broadcast %150 : f32 to vector<16x256xf32>
    %152 = arith.mulf %151, %145 : vector<16x256xf32>
    %153 = arith.addf %118, %152 : vector<16x256xf32>
    %c11_35 = arith.constant 11 : index
    %154 = memref.load %arg7[%c11_35] : memref<24xf32, #tpu.memory_space<smem>>
    %155 = vector.broadcast %154 : f32 to vector<16x256xf32>
    %156 = arith.mulf %155, %145 : vector<16x256xf32>
    %157 = arith.addf %122, %156 : vector<16x256xf32>
    %c12 = arith.constant 12 : index
    %158 = memref.load %arg4[%c12] : memref<24xf32, #tpu.memory_space<smem>>
    %159 = vector.broadcast %158 : f32 to vector<16x256xf32>
    %160 = arith.mulf %10, %159 : vector<16x256xf32>
    %c13 = arith.constant 13 : index
    %161 = memref.load %arg4[%c13] : memref<24xf32, #tpu.memory_space<smem>>
    %162 = vector.broadcast %161 : f32 to vector<16x256xf32>
    %163 = arith.mulf %0, %162 : vector<16x256xf32>
    %164 = arith.addf %160, %163 : vector<16x256xf32>
    %c14 = arith.constant 14 : index
    %165 = memref.load %arg4[%c14] : memref<24xf32, #tpu.memory_space<smem>>
    %166 = vector.broadcast %165 : f32 to vector<16x256xf32>
    %167 = arith.mulf %13, %166 : vector<16x256xf32>
    %168 = arith.addf %164, %167 : vector<16x256xf32>
    %c4_36 = arith.constant 4 : index
    %169 = memref.load %arg5[%c4_36] : memref<8xf32, #tpu.memory_space<smem>>
    %170 = vector.broadcast %169 : f32 to vector<16x256xf32>
    %171 = arith.addf %168, %170 : vector<16x256xf32>
    %cst_37 = arith.constant 1.000000e-01 : f32
    %172 = vector.broadcast %cst_37 : f32 to vector<16x256xf32>
    %173 = arith.mulf %172, %171 : vector<16x256xf32>
    %174 = arith.maximumf %171, %173 : vector<16x256xf32>
    %175 = vector.extract_strided_slice %14 {offsets = [0, 4], sizes = [16, 1], strides = [1, 1]} : vector<16x8xf32> to vector<16x1xf32>
    %c4_38 = arith.constant 4 : index
    %176 = memref.load %arg6[%c4_38] : memref<8xf32, #tpu.memory_space<smem>>
    %177 = vector.broadcast %176 : f32 to vector<16x1xf32>
    %178 = arith.addf %175, %177 : vector<16x1xf32>
    %179 = vector.broadcast %178 : vector<16x1xf32> to vector<16x256xf32>
    %180 = arith.addf %174, %179 : vector<16x256xf32>
    %c12_39 = arith.constant 12 : index
    %181 = memref.load %arg7[%c12_39] : memref<24xf32, #tpu.memory_space<smem>>
    %182 = vector.broadcast %181 : f32 to vector<16x256xf32>
    %183 = arith.mulf %182, %180 : vector<16x256xf32>
    %184 = arith.addf %149, %183 : vector<16x256xf32>
    %c13_40 = arith.constant 13 : index
    %185 = memref.load %arg7[%c13_40] : memref<24xf32, #tpu.memory_space<smem>>
    %186 = vector.broadcast %185 : f32 to vector<16x256xf32>
    %187 = arith.mulf %186, %180 : vector<16x256xf32>
    %188 = arith.addf %153, %187 : vector<16x256xf32>
    %c14_41 = arith.constant 14 : index
    %189 = memref.load %arg7[%c14_41] : memref<24xf32, #tpu.memory_space<smem>>
    %190 = vector.broadcast %189 : f32 to vector<16x256xf32>
    %191 = arith.mulf %190, %180 : vector<16x256xf32>
    %192 = arith.addf %157, %191 : vector<16x256xf32>
    %c15 = arith.constant 15 : index
    %193 = memref.load %arg4[%c15] : memref<24xf32, #tpu.memory_space<smem>>
    %194 = vector.broadcast %193 : f32 to vector<16x256xf32>
    %195 = arith.mulf %10, %194 : vector<16x256xf32>
    %c16 = arith.constant 16 : index
    %196 = memref.load %arg4[%c16] : memref<24xf32, #tpu.memory_space<smem>>
    %197 = vector.broadcast %196 : f32 to vector<16x256xf32>
    %198 = arith.mulf %0, %197 : vector<16x256xf32>
    %199 = arith.addf %195, %198 : vector<16x256xf32>
    %c17 = arith.constant 17 : index
    %200 = memref.load %arg4[%c17] : memref<24xf32, #tpu.memory_space<smem>>
    %201 = vector.broadcast %200 : f32 to vector<16x256xf32>
    %202 = arith.mulf %13, %201 : vector<16x256xf32>
    %203 = arith.addf %199, %202 : vector<16x256xf32>
    %c5_42 = arith.constant 5 : index
    %204 = memref.load %arg5[%c5_42] : memref<8xf32, #tpu.memory_space<smem>>
    %205 = vector.broadcast %204 : f32 to vector<16x256xf32>
    %206 = arith.addf %203, %205 : vector<16x256xf32>
    %cst_43 = arith.constant 1.000000e-01 : f32
    %207 = vector.broadcast %cst_43 : f32 to vector<16x256xf32>
    %208 = arith.mulf %207, %206 : vector<16x256xf32>
    %209 = arith.maximumf %206, %208 : vector<16x256xf32>
    %210 = vector.extract_strided_slice %14 {offsets = [0, 5], sizes = [16, 1], strides = [1, 1]} : vector<16x8xf32> to vector<16x1xf32>
    %c5_44 = arith.constant 5 : index
    %211 = memref.load %arg6[%c5_44] : memref<8xf32, #tpu.memory_space<smem>>
    %212 = vector.broadcast %211 : f32 to vector<16x1xf32>
    %213 = arith.addf %210, %212 : vector<16x1xf32>
    %214 = vector.broadcast %213 : vector<16x1xf32> to vector<16x256xf32>
    %215 = arith.addf %209, %214 : vector<16x256xf32>
    %c15_45 = arith.constant 15 : index
    %216 = memref.load %arg7[%c15_45] : memref<24xf32, #tpu.memory_space<smem>>
    %217 = vector.broadcast %216 : f32 to vector<16x256xf32>
    %218 = arith.mulf %217, %215 : vector<16x256xf32>
    %219 = arith.addf %184, %218 : vector<16x256xf32>
    %c16_46 = arith.constant 16 : index
    %220 = memref.load %arg7[%c16_46] : memref<24xf32, #tpu.memory_space<smem>>
    %221 = vector.broadcast %220 : f32 to vector<16x256xf32>
    %222 = arith.mulf %221, %215 : vector<16x256xf32>
    %223 = arith.addf %188, %222 : vector<16x256xf32>
    %c17_47 = arith.constant 17 : index
    %224 = memref.load %arg7[%c17_47] : memref<24xf32, #tpu.memory_space<smem>>
    %225 = vector.broadcast %224 : f32 to vector<16x256xf32>
    %226 = arith.mulf %225, %215 : vector<16x256xf32>
    %227 = arith.addf %192, %226 : vector<16x256xf32>
    %c18 = arith.constant 18 : index
    %228 = memref.load %arg4[%c18] : memref<24xf32, #tpu.memory_space<smem>>
    %229 = vector.broadcast %228 : f32 to vector<16x256xf32>
    %230 = arith.mulf %10, %229 : vector<16x256xf32>
    %c19 = arith.constant 19 : index
    %231 = memref.load %arg4[%c19] : memref<24xf32, #tpu.memory_space<smem>>
    %232 = vector.broadcast %231 : f32 to vector<16x256xf32>
    %233 = arith.mulf %0, %232 : vector<16x256xf32>
    %234 = arith.addf %230, %233 : vector<16x256xf32>
    %c20 = arith.constant 20 : index
    %235 = memref.load %arg4[%c20] : memref<24xf32, #tpu.memory_space<smem>>
    %236 = vector.broadcast %235 : f32 to vector<16x256xf32>
    %237 = arith.mulf %13, %236 : vector<16x256xf32>
    %238 = arith.addf %234, %237 : vector<16x256xf32>
    %c6_48 = arith.constant 6 : index
    %239 = memref.load %arg5[%c6_48] : memref<8xf32, #tpu.memory_space<smem>>
    %240 = vector.broadcast %239 : f32 to vector<16x256xf32>
    %241 = arith.addf %238, %240 : vector<16x256xf32>
    %cst_49 = arith.constant 1.000000e-01 : f32
    %242 = vector.broadcast %cst_49 : f32 to vector<16x256xf32>
    %243 = arith.mulf %242, %241 : vector<16x256xf32>
    %244 = arith.maximumf %241, %243 : vector<16x256xf32>
    %245 = vector.extract_strided_slice %14 {offsets = [0, 6], sizes = [16, 1], strides = [1, 1]} : vector<16x8xf32> to vector<16x1xf32>
    %c6_50 = arith.constant 6 : index
    %246 = memref.load %arg6[%c6_50] : memref<8xf32, #tpu.memory_space<smem>>
    %247 = vector.broadcast %246 : f32 to vector<16x1xf32>
    %248 = arith.addf %245, %247 : vector<16x1xf32>
    %249 = vector.broadcast %248 : vector<16x1xf32> to vector<16x256xf32>
    %250 = arith.addf %244, %249 : vector<16x256xf32>
    %c18_51 = arith.constant 18 : index
    %251 = memref.load %arg7[%c18_51] : memref<24xf32, #tpu.memory_space<smem>>
    %252 = vector.broadcast %251 : f32 to vector<16x256xf32>
    %253 = arith.mulf %252, %250 : vector<16x256xf32>
    %254 = arith.addf %219, %253 : vector<16x256xf32>
    %c19_52 = arith.constant 19 : index
    %255 = memref.load %arg7[%c19_52] : memref<24xf32, #tpu.memory_space<smem>>
    %256 = vector.broadcast %255 : f32 to vector<16x256xf32>
    %257 = arith.mulf %256, %250 : vector<16x256xf32>
    %258 = arith.addf %223, %257 : vector<16x256xf32>
    %c20_53 = arith.constant 20 : index
    %259 = memref.load %arg7[%c20_53] : memref<24xf32, #tpu.memory_space<smem>>
    %260 = vector.broadcast %259 : f32 to vector<16x256xf32>
    %261 = arith.mulf %260, %250 : vector<16x256xf32>
    %262 = arith.addf %227, %261 : vector<16x256xf32>
    %c21 = arith.constant 21 : index
    %263 = memref.load %arg4[%c21] : memref<24xf32, #tpu.memory_space<smem>>
    %264 = vector.broadcast %263 : f32 to vector<16x256xf32>
    %265 = arith.mulf %10, %264 : vector<16x256xf32>
    %c22 = arith.constant 22 : index
    %266 = memref.load %arg4[%c22] : memref<24xf32, #tpu.memory_space<smem>>
    %267 = vector.broadcast %266 : f32 to vector<16x256xf32>
    %268 = arith.mulf %0, %267 : vector<16x256xf32>
    %269 = arith.addf %265, %268 : vector<16x256xf32>
    %c23 = arith.constant 23 : index
    %270 = memref.load %arg4[%c23] : memref<24xf32, #tpu.memory_space<smem>>
    %271 = vector.broadcast %270 : f32 to vector<16x256xf32>
    %272 = arith.mulf %13, %271 : vector<16x256xf32>
    %273 = arith.addf %269, %272 : vector<16x256xf32>
    %c7_54 = arith.constant 7 : index
    %274 = memref.load %arg5[%c7_54] : memref<8xf32, #tpu.memory_space<smem>>
    %275 = vector.broadcast %274 : f32 to vector<16x256xf32>
    %276 = arith.addf %273, %275 : vector<16x256xf32>
    %cst_55 = arith.constant 1.000000e-01 : f32
    %277 = vector.broadcast %cst_55 : f32 to vector<16x256xf32>
    %278 = arith.mulf %277, %276 : vector<16x256xf32>
    %279 = arith.maximumf %276, %278 : vector<16x256xf32>
    %280 = vector.extract_strided_slice %14 {offsets = [0, 7], sizes = [16, 1], strides = [1, 1]} : vector<16x8xf32> to vector<16x1xf32>
    %c7_56 = arith.constant 7 : index
    %281 = memref.load %arg6[%c7_56] : memref<8xf32, #tpu.memory_space<smem>>
    %282 = vector.broadcast %281 : f32 to vector<16x1xf32>
    %283 = arith.addf %280, %282 : vector<16x1xf32>
    %284 = vector.broadcast %283 : vector<16x1xf32> to vector<16x256xf32>
    %285 = arith.addf %279, %284 : vector<16x256xf32>
    %c21_57 = arith.constant 21 : index
    %286 = memref.load %arg7[%c21_57] : memref<24xf32, #tpu.memory_space<smem>>
    %287 = vector.broadcast %286 : f32 to vector<16x256xf32>
    %288 = arith.mulf %287, %285 : vector<16x256xf32>
    %289 = arith.addf %254, %288 : vector<16x256xf32>
    %c22_58 = arith.constant 22 : index
    %290 = memref.load %arg7[%c22_58] : memref<24xf32, #tpu.memory_space<smem>>
    %291 = vector.broadcast %290 : f32 to vector<16x256xf32>
    %292 = arith.mulf %291, %285 : vector<16x256xf32>
    %293 = arith.addf %258, %292 : vector<16x256xf32>
    %c23_59 = arith.constant 23 : index
    %294 = memref.load %arg7[%c23_59] : memref<24xf32, #tpu.memory_space<smem>>
    %295 = vector.broadcast %294 : f32 to vector<16x256xf32>
    %296 = arith.mulf %295, %285 : vector<16x256xf32>
    %297 = arith.addf %262, %296 : vector<16x256xf32>
    %c1_i32_60 = arith.constant 1 : i32
    %298 = tpu.dynamic_rotate %289 by %c1_i32_60 dim 1 : vector<16x256xf32>, i32 -> vector<16x256xf32>
    %cst_61 = arith.constant 0.000000e+00 : f32
    %299 = vector.broadcast %cst_61 : f32 to vector<16x256xf32>
    %300 = arith.select %5, %298, %299 : vector<16x256xi1>, vector<16x256xf32>
    %301 = arith.addf %293, %300 : vector<16x256xf32>
    %c255_i32_62 = arith.constant 255 : i32
    %302 = tpu.dynamic_rotate %297 by %c255_i32_62 dim 1 : vector<16x256xf32>, i32 -> vector<16x256xf32>
    %cst_63 = arith.constant 0.000000e+00 : f32
    %303 = vector.broadcast %cst_63 : f32 to vector<16x256xf32>
    %304 = arith.select %7, %302, %303 : vector<16x256xi1>, vector<16x256xf32>
    %305 = arith.addf %301, %304 : vector<16x256xf32>
    %c0_64 = arith.constant 0 : index
    %306 = memref.load %arg8[%c0_64] : memref<1xf32, #tpu.memory_space<smem>>
    %307 = vector.broadcast %306 : f32 to vector<16x256xf32>
    %308 = arith.addf %305, %307 : vector<16x256xf32>
    %c0_65 = arith.constant 0 : index
    %c0_66 = arith.constant 0 : index
    %309 = vector.load %arg9[%c0_65, %c0_66] : memref<16x256xf32, #tpu.memory_space<vmem>>, vector<16x256xf32>
    tpu.vector_store %arg9[%c0_65, %c0_66], %308 {strides = array<i32>} : memref<16x256xf32, #tpu.memory_space<vmem>>, vector<16x256xf32>,
    return
  }
  func.func @transform_0(%arg0: i32) -> (i32, i32) {
    %c0_i32 = arith.constant 0 : i32
    %c0_i32_0 = arith.constant 0 : i32
    return %arg0, %c0_i32 : i32, i32
  }
  func.func @transform_1(%arg0: i32) -> (i32, i32) {
    %c0_i32 = arith.constant 0 : i32
    %c0_i32_0 = arith.constant 0 : i32
    return %arg0, %c0_i32 : i32, i32
  }
  func.func @transform_2(%arg0: i32) -> (i32, i32) {
    %c0_i32 = arith.constant 0 : i32
    %c0_i32_0 = arith.constant 0 : i32
    %c0_i32_1 = arith.constant 0 : i32
    return %c0_i32, %c0_i32_0 : i32, i32
  }
  func.func @transform_3(%arg0: i32) -> i32 {
    %c0_i32 = arith.constant 0 : i32
    %c0_i32_0 = arith.constant 0 : i32
    return %c0_i32 : i32
  }
  func.func @transform_4(%arg0: i32) -> i32 {
    %c0_i32 = arith.constant 0 : i32
    %c0_i32_0 = arith.constant 0 : i32
    return %c0_i32 : i32
  }
  func.func @transform_5(%arg0: i32) -> i32 {
    %c0_i32 = arith.constant 0 : i32
    %c0_i32_0 = arith.constant 0 : i32
    return %c0_i32 : i32
  }
  func.func @transform_6(%arg0: i32) -> i32 {
    %c0_i32 = arith.constant 0 : i32
    %c0_i32_0 = arith.constant 0 : i32
    return %c0_i32 : i32
  }
  func.func @transform_7(%arg0: i32) -> i32 {
    %c0_i32 = arith.constant 0 : i32
    %c0_i32_0 = arith.constant 0 : i32
    return %c0_i32 : i32
  }
  func.func @transform_8(%arg0: i32) -> (i32, i32) {
    %c0_i32 = arith.constant 0 : i32
    %c0_i32_0 = arith.constant 0 : i32
    return %arg0, %c0_i32 : i32, i32
  }
}

</mosaic_0001>

<llo_original>
// kernel: tpu_custom_call.1
$region0: #{tpu_custom_call.1}
  #allocation0 [shape = 'u32[]', space=smem, size = 0x4, offset = 0x4, fixed_abs, tag = 'smem constant byte address 0x4 - core index']
  #allocation1 [shape = 'u32[72,128]{1,0:T(1,128)}', space=vmem, size = 0x9000, scoped, tag = 'internal scratch']
  #allocation2 [shape = 'f32[1]{0:T(128)S(6)}', space=smem, size = 0x200, scoped, tag = 'scoped memory for tpu_custom_call.1']
  %s0 = inlined_call_operand.hbm [shape: f32[16,256], index: 0, kind: input, shape index: {}]
  %s1 = inlined_call_operand.hbm [shape: f32[16,128], index: 1, kind: input, shape index: {}]
  %s2 = inlined_call_operand.hbm [shape: f32[8,128], index: 2, kind: input, shape index: {}]
  %s3 = inlined_call_operand.vmem [shape: f32[24], index: 3, kind: input, shape index: {}]
  %s4 = inlined_call_operand.vmem [shape: f32[8], index: 4, kind: input, shape index: {}]
  %s5 = inlined_call_operand.vmem [shape: f32[8], index: 5, kind: input, shape index: {}]
  %s6 = inlined_call_operand.vmem [shape: f32[24], index: 6, kind: input, shape index: {}]
  %s7 = inlined_call_operand.<no memory space> [shape: f32[1], index: 7, kind: input, shape index: {}]
  %s8 = inlined_call_operand.hbm [shape: f32[16,256], index: 8, kind: output, shape index: {}]
  %s9 = sld [smem:[#allocation0]]
  $region70: #{tpu_custom_call.1} parent=0
    _
  %s11 = ssub.s32 1, %s9
  %s12 = scalar_select 0, %s11, %s9
  %13 = sst [smem:[#allocation2]] %s7
  $region1: #{tpu_custom_call.1} parent=0
    #allocation3 [shape = 'u8[16384]{0}', space=vmem, size = 0x4000, scoped, tag = 'input window, operand 0, single buffered']
    #allocation4 [shape = 's32[1]{0}', space=sflag, size = 0x4, scoped, tag = 'scoped memory for tpu_custom_call.1']
    #allocation5 [shape = 's32[1]{0}', space=sflag, size = 0x4, scoped, tag = 'scoped memory for tpu_custom_call.1']
    #allocation6 [shape = 's32[1]{0}', space=sflag, size = 0x4, scoped, tag = 'scoped memory for tpu_custom_call.1']
    #allocation7 [shape = 'u8[8192]{0}', space=vmem, size = 0x2000, scoped, tag = 'input window, operand 1, single buffered']
    #allocation8 [shape = 's32[1]{0}', space=sflag, size = 0x4, scoped, tag = 'scoped memory for tpu_custom_call.1']
    #allocation9 [shape = 'u8[4096]{0}', space=vmem, size = 0x1000, scoped, tag = 'input window, operand 2, single buffered']
    #allocation10 [shape = 'u8[512]{0}', space=smem, size = 0x200, scoped, tag = 'input window, operand 3, single buffered']
    #allocation11 [shape = 'u8[512]{0}', space=smem, size = 0x200, scoped, tag = 'input window, operand 4, single buffered']
    #allocation12 [shape = 's32[1]{0}', space=sflag, size = 0x4, scoped, tag = 'scoped memory for tpu_custom_call.1']
    #allocation13 [shape = 'u8[512]{0}', space=smem, size = 0x200, scoped, tag = 'input window, operand 5, single buffered']
    #allocation14 [shape = 'u8[512]{0}', space=smem, size = 0x200, scoped, tag = 'input window, operand 6, single buffered']
    #allocation15 [shape = 's32[1]{0}', space=sflag, size = 0x4, scoped, tag = 'scoped memory for tpu_custom_call.1']
    #allocation16 [shape = 'u8[16384]{0}', space=vmem, size = 0x4000, scoped, tag = 'output window, operand 0, single buffered']
    %14 = vsyncpa [#allocation4], 0
    %15 = vsyncpa [#allocation8], 0
    %16 = vsyncpa [#allocation6], 0
    %17 = vsyncpa [#allocation12], 0
    %18 = vsyncpa [#allocation15], 0
    %19 = vsyncpa [#allocation5], 0
    // Predicated region
    $region2: #{tpu_custom_call.1} parent=1 // pred_check
      _
    $region3: #{tpu_custom_call.1} parent=1 // pred_check_branch
      %21 = sbr.rel (0) target = $region5
    $region4: #{tpu_custom_call.1} parent=1 // pred_region
      %23 = vsyncadd [#allocation4], 0
      %s24 = sshll.u32 %s0, 4
      %s25 = int_to_ptr.hbm [resolvable:$true] %s24
      %s26 = sshll.u32 [#allocation3], 4
      %s27 = int_to_ptr.vmem [resolvable:$true] %s26
      %32 = dma.hbm_to_vmem [thread:$0]  %s25, 512, %s27, [#allocation4], 256, 256, 16
    $region5: #{tpu_custom_call.1} parent=1 // pred_fallthru
      _
    // Predicated region
    $region6: #{tpu_custom_call.1} parent=1 // pred_check
      _
    $region7: #{tpu_custom_call.1} parent=1 // pred_check_branch
      %34 = sbr.rel (0) target = $region9
    $region8: #{tpu_custom_call.1} parent=1 // pred_region
      %36 = vsyncadd [#allocation8], 0
      %s37 = sshll.u32 %s1, 4
      %s38 = int_to_ptr.hbm [resolvable:$true] %s37
      %s39 = sshll.u32 [#allocation7], 4
      %s40 = int_to_ptr.vmem [resolvable:$true] %s39
      %45 = dma.hbm_to_vmem [thread:$0]  %s38, 256, %s40, [#allocation8], 128, 128, 8
    $region9: #{tpu_custom_call.1} parent=1 // pred_fallthru
      _
    // Predicated region
    $region10: #{tpu_custom_call.1} parent=1 // pred_check
      _
    $region11: #{tpu_custom_call.1} parent=1 // pred_check_branch
      %47 = sbr.rel (0) target = $region13
    $region12: #{tpu_custom_call.1} parent=1 // pred_region
      %49 = vsyncadd [#allocation8], 0
      %s51 = sshll.u32 %s2, 4
      %s52 = int_to_ptr.hbm [resolvable:$true] %s51
      %s53 = sshll.u32 [#allocation9], 4
      %s54 = int_to_ptr.vmem [resolvable:$true] %s53
      %56 = dma.hbm_to_vmem [thread:$0]  %s52, 128, %s54, [#allocation8]
    $region13: #{tpu_custom_call.1} parent=1 // pred_fallthru
      _
    // Predicated region
    $region14: #{tpu_custom_call.1} parent=1 // pred_check
      _
    $region15: #{tpu_custom_call.1} parent=1 // pred_check_branch
      %58 = sbr.rel (0) target = $region17
    $region16: #{tpu_custom_call.1} parent=1 // pred_region
      %60 = vsyncadd [#allocation6], 0
      %s62 = sshll.u32 %s3, 4
      %s63 = int_to_ptr.vmem [resolvable:$true] %s62
      %65 = dma.vmem_to_smem %s63, 16, [#allocation10], [#allocation6]
    $region17: #{tpu_custom_call.1} parent=1 // pred_fallthru
      _
    // Predicated region
    $region18: #{tpu_custom_call.1} parent=1 // pred_check
      _
    $region19: #{tpu_custom_call.1} parent=1 // pred_check_branch
      %67 = sbr.rel (0) target = $region21
    $region20: #{tpu_custom_call.1} parent=1 // pred_region
      %69 = vsyncadd [#allocation12], 0
      %s71 = sshll.u32 %s4, 4
      %s72 = int_to_ptr.vmem [resolvable:$true] %s71
      %74 = dma.vmem_to_smem %s72, 16, [#allocation11], [#allocation12]
    $region21: #{tpu_custom_call.1} parent=1 // pred_fallthru
      _
    // Predicated region
    $region22: #{tpu_custom_call.1} parent=1 // pred_check
      _
    $region23: #{tpu_custom_call.1} parent=1 // pred_check_branch
      %76 = sbr.rel (0) target = $region25
    $region24: #{tpu_custom_call.1} parent=1 // pred_region
      %78 = vsyncadd [#allocation12], 0
      %s80 = sshll.u32 %s5, 4
      %s81 = int_to_ptr.vmem [resolvable:$true] %s80
      %83 = dma.vmem_to_smem %s81, 16, [#allocation13], [#allocation12]
    $region25: #{tpu_custom_call.1} parent=1 // pred_fallthru
      _
    // Predicated region
    $region26: #{tpu_custom_call.1} parent=1 // pred_check
      _
    $region27: #{tpu_custom_call.1} parent=1 // pred_check_branch
      %85 = sbr.rel (0) target = $region29
    $region28: #{tpu_custom_call.1} parent=1 // pred_region
      %87 = vsyncadd [#allocation15], 0
      %s89 = sshll.u32 %s6, 4
      %s90 = int_to_ptr.vmem [resolvable:$true] %s89
      %92 = dma.vmem_to_smem %s90, 16, [#allocation14], [#allocation15]
    $region29: #{tpu_custom_call.1} parent=1 // pred_fallthru
      _
    // Predicated region
    $region30: #{tpu_custom_call.1} parent=1 // pred_check
      _
    $region31: #{tpu_custom_call.1} parent=1 // pred_check_branch
      %94 = sbr.rel (0) target = $region33
    $region32: #{tpu_custom_call.1} parent=1 // pred_region
      _
    $region33: #{tpu_custom_call.1} parent=1 // pred_fallthru
      _
    // Predicated region
    $region34: #{tpu_custom_call.1} parent=1 // pred_check
      _
    $region35: #{tpu_custom_call.1} parent=1 // pred_check_branch
      %96 = sbr.rel (0) target = $region37
    $region36: #{tpu_custom_call.1} parent=1 // pred_region
      %98 = dma.done [#allocation4], 512
    $region37: #{tpu_custom_call.1} parent=1 // pred_fallthru
      _
    // Predicated region
    $region38: #{tpu_custom_call.1} parent=1 // pred_check
      _
    $region39: #{tpu_custom_call.1} parent=1 // pred_check_branch
      %100 = sbr.rel (0) target = $region41
    $region40: #{tpu_custom_call.1} parent=1 // pred_region
      %102 = dma.done [#allocation8], 256
    $region41: #{tpu_custom_call.1} parent=1 // pred_fallthru
      _
    // Predicated region
    $region42: #{tpu_custom_call.1} parent=1 // pred_check
      _
    $region43: #{tpu_custom_call.1} parent=1 // pred_check_branch
      %104 = sbr.rel (0) target = $region45
    $region44: #{tpu_custom_call.1} parent=1 // pred_region
      %106 = dma.done [#allocation8], 128
    $region45: #{tpu_custom_call.1} parent=1 // pred_fallthru
      _
    // Predicated region
    $region46: #{tpu_custom_call.1} parent=1 // pred_check
      _
    $region47: #{tpu_custom_call.1} parent=1 // pred_check_branch
      %108 = sbr.rel (0) target = $region49
    $region48: #{tpu_custom_call.1} parent=1 // pred_region
      %110 = dma.done [#allocation6], 16
    $region49: #{tpu_custom_call.1} parent=1 // pred_fallthru
      _
    // Predicated region
    $region50: #{tpu_custom_call.1} parent=1 // pred_check
      _
    $region51: #{tpu_custom_call.1} parent=1 // pred_check_branch
      %112 = sbr.rel (0) target = $region53
    $region52: #{tpu_custom_call.1} parent=1 // pred_region
      %114 = dma.done [#allocation12], 16
    $region53: #{tpu_custom_call.1} parent=1 // pred_fallthru
      _
    // Predicated region
    $region54: #{tpu_custom_call.1} parent=1 // pred_check
      _
    $region55: #{tpu_custom_call.1} parent=1 // pred_check_branch
      %116 = sbr.rel (0) target = $region57
    $region56: #{tpu_custom_call.1} parent=1 // pred_region
      %118 = dma.done [#allocation12], 16
    $region57: #{tpu_custom_call.1} parent=1 // pred_fallthru
      _
    // Predicated region
    $region58: #{tpu_custom_call.1} parent=1 // pred_check
      _
    $region59: #{tpu_custom_call.1} parent=1 // pred_check_branch
      %120 = sbr.rel (0) target = $region61
    $region60: #{tpu_custom_call.1} parent=1 // pred_region
      %122 = dma.done [#allocation15], 16
    $region61: #{tpu_custom_call.1} parent=1 // pred_fallthru
      _
    %123 = sfence
    %v124 = vld [vmem:[#allocation3] sm:$0xff]
    %v125 = vld [vmem:[#allocation3 + $0x8] sm:$0xff]
    %v126 = vld [vmem:[#allocation3 + $0x10] sm:$0xff]
    %v127 = vld [vmem:[#allocation3 + $0x18] sm:$0xff]
    %v128 = vld [vmem:[#allocation7] sm:$0xff]
    %v129 = vld [vmem:[#allocation7 + $0x8] sm:$0xff]
    %v130 = vld [vmem:[#allocation9] sm:$0xff]
    %v131 = vlaneseq
    %v132 = vand.u32 %v131, 127
    %v133 = vadd.s32 %v132, 128
    %vm134 = vcmp.ne.s32.totalorder %v132, 0
    %vm135 = vcmp.ne.s32.totalorder %v133, 0
    %vm136 = vcmp.ne.s32.totalorder %v132, 255
    %vm137 = vcmp.ne.s32.totalorder %v133, 255
    %138 = vrot.lane.b32.xlu0 %v124, 1
    %v139 = vpop.permute.xlu0 %138
    %140 = vrot.lane.b32.xlu0 %v126, 1
    %v141 = vpop.permute.xlu0 %140
    %142 = vrot.lane.b32.xlu0 %v125, 1
    %v143 = vpop.permute.xlu0 %142
    %144 = vrot.lane.b32.xlu0 %v127, 1
    %v145 = vpop.permute.xlu0 %144
    %vm146 = vcmp.lt.s32.totalorder %v132, 1
    %v147 = vsel %vm146, %v139, %v143
    %v148 = vsel %vm146, %v141, %v145
    %v149 = vsel %vm146, %v143, %v139
    %v150 = vsel %vm146, %v145, %v141
    %v151 = vsel %vm134, %v149, 0.0
    %v152 = vsel %vm135, %v147, 0.0
    %v153 = vsel %vm134, %v150, 0.0
    %v154 = vsel %vm135, %v148, 0.0
    %155 = vrot.lane.b32.xlu0 %v124, 127
    %v156 = vpop.permute.xlu0 %155
    %157 = vrot.lane.b32.xlu0 %v126, 127
    %v158 = vpop.permute.xlu0 %157
    %159 = vrot.lane.b32.xlu0 %v125, 127
    %v160 = vpop.permute.xlu0 %159
    %161 = vrot.lane.b32.xlu0 %v127, 127
    %v162 = vpop.permute.xlu0 %161
    %vm163 = vcmp.lt.s32.totalorder %v132, 127
    %v164 = vsel %vm163, %v156, %v160
    %v165 = vsel %vm163, %v158, %v162
    %v166 = vsel %vm163, %v160, %v156
    %v167 = vsel %vm163, %v162, %v158
    %v168 = vsel %vm136, %v164, 0.0
    %v169 = vsel %vm137, %v166, 0.0
    %v170 = vsel %vm136, %v165, 0.0
    %v171 = vsel %vm137, %v167, 0.0
    %172 = vmatpush.xpose.msra.mxu0 0.0
    %173 = vmatpush.xpose.msra.mxu0 0.0
    %174 = vmatpush.xpose.msra.mxu0 0.0
    %175 = vmatpush.xpose.msra.mxu0 0.0
    %176 = vmatpush.xpose.msra.mxu0 0.0
    %177 = vmatpush.xpose.msra.mxu0 0.0
    %178 = vmatpush.xpose.msra.mxu0 0.0
    %179 = vmatpush.xpose.msra.mxu0 0.0
    %180 = vmatpush.xpose.msra.mxu0 0.0
    %181 = vmatpush.xpose.msra.mxu0 0.0
    %182 = vmatpush.xpose.msra.mxu0 0.0
    %183 = vmatpush.xpose.msra.mxu0 0.0
    %184 = vmatpush.xpose.msra.mxu0 0.0
    %185 = vmatpush.xpose.msra.mxu0 0.0
    %186 = vmatpush.xpose.msra.mxu0 0.0
    %187 = vmatpush.xpose.msra.mxu0 %v130
    %188 = vmatmul.f32.gmra.mxu0 %v128
    %v189 = vpop.f32.mrf.mxu0
    %v190 = vadd.f32 0.0, %v189
    %191 = vmatmul.f32.gmra.mxu0 %v129
    %v192 = vpop.f32.mrf.mxu0
    %v193 = vadd.f32 0.0, %v192
    %194 = vdwg.mxu0
    %s195 = sld [smem:[#allocation10]]
    %v196 = vstv %s195
    %v197 = vmul.f32 %v151, %v196
    %v198 = vmul.f32 %v152, %v196
    %v199 = vmul.f32 %v153, %v196
    %v200 = vmul.f32 %v154, %v196
    %s201 = sld [smem:[#allocation10 + $0x1]]
    %v202 = vstv %s201
    %v203 = vmul.f32 %v124, %v202
    %v204 = vmul.f32 %v125, %v202
    %v205 = vmul.f32 %v126, %v202
    %v206 = vmul.f32 %v127, %v202
    %v207 = vadd.f32 %v197, %v203
    %v208 = vadd.f32 %v198, %v204
    %v209 = vadd.f32 %v199, %v205
    %v210 = vadd.f32 %v200, %v206
    %s211 = sld [smem:[#allocation10 + $0x2]]
    %v212 = vstv %s211
    %v213 = vmul.f32 %v168, %v212
    %v214 = vmul.f32 %v169, %v212
    %v215 = vmul.f32 %v170, %v212
    %v216 = vmul.f32 %v171, %v212
    %v217 = vadd.f32 %v207, %v213
    %v218 = vadd.f32 %v208, %v214
    %v219 = vadd.f32 %v209, %v215
    %v220 = vadd.f32 %v210, %v216
    %s221 = sld [smem:[#allocation11]]
    %v222 = vstv %s221
    %v223 = vadd.f32 %v217, %v222
    %v224 = vadd.f32 %v218, %v222
    %v225 = vadd.f32 %v219, %v222
    %v226 = vadd.f32 %v220, %v222
    %v227 = vmul.f32 %v223, 0.1
    %v228 = vmul.f32 %v224, 0.1
    %v229 = vmul.f32 %v225, 0.1
    %v230 = vmul.f32 %v226, 0.1
    %v231 = vmax.f32 %v223, %v227
    %v232 = vmax.f32 %v224, %v228
    %v233 = vmax.f32 %v225, %v229
    %v234 = vmax.f32 %v226, %v230
    %s235 = sld [smem:[#allocation13]]
    %v236 = vstv %s235
    %v237 = vadd.f32 %v190, %v236
    %v238 = vadd.f32 %v193, %v236
    %240 = vset.pattern.permute.xlu0 0
    %241 = vperm.xlu0 %240, %v237
    %v242 = vpop.permute.xlu0 %241
    %245 = vset.pattern.permute.xlu0 0
    %246 = vperm.xlu0 %245, %v238
    %v247 = vpop.permute.xlu0 %246
    %v249 = vadd.f32 %v231, %v242
    %v250 = vadd.f32 %v232, %v242
    %v251 = vadd.f32 %v233, %v247
    %v252 = vadd.f32 %v234, %v247
    %s253 = sld [smem:[#allocation14]]
    %v254 = vstv %s253
    %v255 = vmul.f32 %v254, %v249
    %v256 = vmul.f32 %v254, %v250
    %v257 = vmul.f32 %v254, %v251
    %v258 = vmul.f32 %v254, %v252
    %v259 = vadd.f32 %v255, 0.0
    %v260 = vadd.f32 %v256, 0.0
    %v261 = vadd.f32 %v257, 0.0
    %v262 = vadd.f32 %v258, 0.0
    %s263 = sld [smem:[#allocation14 + $0x1]]
    %v264 = vstv %s263
    %v265 = vmul.f32 %v264, %v249
    %v266 = vmul.f32 %v264, %v250
    %v267 = vmul.f32 %v264, %v251
    %v268 = vmul.f32 %v264, %v252
    %v269 = vadd.f32 %v265, 0.0
    %v270 = vadd.f32 %v266, 0.0
    %v271 = vadd.f32 %v267, 0.0
    %v272 = vadd.f32 %v268, 0.0
    %s273 = sld [smem:[#allocation14 + $0x2]]
    %v274 = vstv %s273
    %v275 = vmul.f32 %v274, %v249
    %v276 = vmul.f32 %v274, %v250
    %v277 = vmul.f32 %v274, %v251
    %v278 = vmul.f32 %v274, %v252
    %v279 = vadd.f32 %v275, 0.0
    %v280 = vadd.f32 %v276, 0.0
    %v281 = vadd.f32 %v277, 0.0
    %v282 = vadd.f32 %v278, 0.0
    %s283 = sld [smem:[#allocation10 + $0x3]]
    %v284 = vstv %s283
    %v285 = vmul.f32 %v151, %v284
    %v286 = vmul.f32 %v152, %v284
    %v287 = vmul.f32 %v153, %v284
    %v288 = vmul.f32 %v154, %v284
    %s289 = sld [smem:[#allocation10 + $0x4]]
    %v290 = vstv %s289
    %v291 = vmul.f32 %v124, %v290
    %v292 = vmul.f32 %v125, %v290
    %v293 = vmul.f32 %v126, %v290
    %v294 = vmul.f32 %v127, %v290
    %v295 = vadd.f32 %v285, %v291
    %v296 = vadd.f32 %v286, %v292
    %v297 = vadd.f32 %v287, %v293
    %v298 = vadd.f32 %v288, %v294
    %s299 = sld [smem:[#allocation10 + $0x5]]
    %v300 = vstv %s299
    %v301 = vmul.f32 %v168, %v300
    %v302 = vmul.f32 %v169, %v300
    %v303 = vmul.f32 %v170, %v300
    %v304 = vmul.f32 %v171, %v300
    %v305 = vadd.f32 %v295, %v301
    %v306 = vadd.f32 %v296, %v302
    %v307 = vadd.f32 %v297, %v303
    %v308 = vadd.f32 %v298, %v304
    %s309 = sld [smem:[#allocation11 + $0x1]]
    %v310 = vstv %s309
    %v311 = vadd.f32 %v305, %v310
    %v312 = vadd.f32 %v306, %v310
    %v313 = vadd.f32 %v307, %v310
    %v314 = vadd.f32 %v308, %v310
    %v315 = vmul.f32 %v311, 0.1
    %v316 = vmul.f32 %v312, 0.1
    %v317 = vmul.f32 %v313, 0.1
    %v318 = vmul.f32 %v314, 0.1
    %v319 = vmax.f32 %v311, %v315
    %v320 = vmax.f32 %v312, %v316
    %v321 = vmax.f32 %v313, %v317
    %v322 = vmax.f32 %v314, %v318
    %s323 = sld [smem:[#allocation13 + $0x1]]
    %v324 = vstv %s323
    %v325 = vadd.f32 %v190, %v324
    %v326 = vadd.f32 %v193, %v324
    %328 = vset.pattern.permute.xlu0 1
    %329 = vperm.xlu0 %328, %v325
    %v330 = vpop.permute.xlu0 %329
    %333 = vset.pattern.permute.xlu0 1
    %334 = vperm.xlu0 %333, %v326
    %v335 = vpop.permute.xlu0 %334
    %v337 = vadd.f32 %v319, %v330
    %v338 = vadd.f32 %v320, %v330
    %v339 = vadd.f32 %v321, %v335
    %v340 = vadd.f32 %v322, %v335
    %s341 = sld [smem:[#allocation14 + $0x3]]
    %v342 = vstv %s341
    %v343 = vmul.f32 %v342, %v337
    %v344 = vmul.f32 %v342, %v338
    %v345 = vmul.f32 %v342, %v339
    %v346 = vmul.f32 %v342, %v340
    %v347 = vadd.f32 %v259, %v343
    %v348 = vadd.f32 %v260, %v344
    %v349 = vadd.f32 %v261, %v345
    %v350 = vadd.f32 %v262, %v346
    %s351 = sld [smem:[#allocation14 + $0x4]]
    %v352 = vstv %s351
    %v353 = vmul.f32 %v352, %v337
    %v354 = vmul.f32 %v352, %v338
    %v355 = vmul.f32 %v352, %v339
    %v356 = vmul.f32 %v352, %v340
    %v357 = vadd.f32 %v269, %v353
    %v358 = vadd.f32 %v270, %v354
    %v359 = vadd.f32 %v271, %v355
    %v360 = vadd.f32 %v272, %v356
    %s361 = sld [smem:[#allocation14 + $0x5]]
    %v362 = vstv %s361
    %v363 = vmul.f32 %v362, %v337
    %v364 = vmul.f32 %v362, %v338
    %v365 = vmul.f32 %v362, %v339
    %v366 = vmul.f32 %v362, %v340
    %v367 = vadd.f32 %v279, %v363
    %v368 = vadd.f32 %v280, %v364
    %v369 = vadd.f32 %v281, %v365
    %v370 = vadd.f32 %v282, %v366
    %s371 = sld [smem:[#allocation10 + $0x6]]
    %v372 = vstv %s371
    %v373 = vmul.f32 %v151, %v372
    %v374 = vmul.f32 %v152, %v372
    %v375 = vmul.f32 %v153, %v372
    %v376 = vmul.f32 %v154, %v372
    %s377 = sld [smem:[#allocation10 + $0x7]]
    %v378 = vstv %s377
    %v379 = vmul.f32 %v124, %v378
    %v380 = vmul.f32 %v125, %v378
    %v381 = vmul.f32 %v126, %v378
    %v382 = vmul.f32 %v127, %v378
    %v383 = vadd.f32 %v373, %v379
    %v384 = vadd.f32 %v374, %v380
    %v385 = vadd.f32 %v375, %v381
    %v386 = vadd.f32 %v376, %v382
    %s387 = sld [smem:[#allocation10 + $0x8]]
    %v388 = vstv %s387
    %v389 = vmul.f32 %v168, %v388
    %v390 = vmul.f32 %v169, %v388
    %v391 = vmul.f32 %v170, %v388
    %v392 = vmul.f32 %v171, %v388
    %v393 = vadd.f32 %v383, %v389
    %v394 = vadd.f32 %v384, %v390
    %v395 = vadd.f32 %v385, %v391
    %v396 = vadd.f32 %v386, %v392
    %s397 = sld [smem:[#allocation11 + $0x2]]
    %v398 = vstv %s397
    %v399 = vadd.f32 %v393, %v398
    %v400 = vadd.f32 %v394, %v398
    %v401 = vadd.f32 %v395, %v398
    %v402 = vadd.f32 %v396, %v398
    %v403 = vmul.f32 %v399, 0.1
    %v404 = vmul.f32 %v400, 0.1
    %v405 = vmul.f32 %v401, 0.1
    %v406 = vmul.f32 %v402, 0.1
    %v407 = vmax.f32 %v399, %v403
    %v408 = vmax.f32 %v400, %v404
    %v409 = vmax.f32 %v401, %v405
    %v410 = vmax.f32 %v402, %v406
    %s411 = sld [smem:[#allocation13 + $0x2]]
    %v412 = vstv %s411
    %v413 = vadd.f32 %v190, %v412
    %v414 = vadd.f32 %v193, %v412
    %416 = vset.pattern.permute.xlu0 2
    %417 = vperm.xlu0 %416, %v413
    %v418 = vpop.permute.xlu0 %417
    %421 = vset.pattern.permute.xlu0 2
    %422 = vperm.xlu0 %421, %v414
    %v423 = vpop.permute.xlu0 %422
    %v425 = vadd.f32 %v407, %v418
    %v426 = vadd.f32 %v408, %v418
    %v427 = vadd.f32 %v409, %v423
    %v428 = vadd.f32 %v410, %v423
    %s429 = sld [smem:[#allocation14 + $0x6]]
    %v430 = vstv %s429
    %v431 = vmul.f32 %v430, %v425
    %v432 = vmul.f32 %v430, %v426
    %v433 = vmul.f32 %v430, %v427
    %v434 = vmul.f32 %v430, %v428
    %v435 = vadd.f32 %v347, %v431
    %v436 = vadd.f32 %v348, %v432
    %v437 = vadd.f32 %v349, %v433
    %v438 = vadd.f32 %v350, %v434
    %s439 = sld [smem:[#allocation14 + $0x7]]
    %v440 = vstv %s439
    %v441 = vmul.f32 %v440, %v425
    %v442 = vmul.f32 %v440, %v426
    %v443 = vmul.f32 %v440, %v427
    %v444 = vmul.f32 %v440, %v428
    %v445 = vadd.f32 %v357, %v441
    %v446 = vadd.f32 %v358, %v442
    %v447 = vadd.f32 %v359, %v443
    %v448 = vadd.f32 %v360, %v444
    %s449 = sld [smem:[#allocation14 + $0x8]]
    %v450 = vstv %s449
    %v451 = vmul.f32 %v450, %v425
    %v452 = vmul.f32 %v450, %v426
    %v453 = vmul.f32 %v450, %v427
    %v454 = vmul.f32 %v450, %v428
    %v455 = vadd.f32 %v367, %v451
    %v456 = vadd.f32 %v368, %v452
    %v457 = vadd.f32 %v369, %v453
    %v458 = vadd.f32 %v370, %v454
    %s459 = sld [smem:[#allocation10 + $0x9]]
    %v460 = vstv %s459
    %v461 = vmul.f32 %v151, %v460
    %v462 = vmul.f32 %v152, %v460
    %v463 = vmul.f32 %v153, %v460
    %v464 = vmul.f32 %v154, %v460
    %s465 = sld [smem:[#allocation10 + $0xa]]
    %v466 = vstv %s465
    %v467 = vmul.f32 %v124, %v466
    %v468 = vmul.f32 %v125, %v466
    %v469 = vmul.f32 %v126, %v466
    %v470 = vmul.f32 %v127, %v466
    %v471 = vadd.f32 %v461, %v467
    %v472 = vadd.f32 %v462, %v468
    %v473 = vadd.f32 %v463, %v469
    %v474 = vadd.f32 %v464, %v470
    %s475 = sld [smem:[#allocation10 + $0xb]]
    %v476 = vstv %s475
    %v477 = vmul.f32 %v168, %v476
    %v478 = vmul.f32 %v169, %v476
    %v479 = vmul.f32 %v170, %v476
    %v480 = vmul.f32 %v171, %v476
    %v481 = vadd.f32 %v471, %v477
    %v482 = vadd.f32 %v472, %v478
    %v483 = vadd.f32 %v473, %v479
    %v484 = vadd.f32 %v474, %v480
    %s485 = sld [smem:[#allocation11 + $0x3]]
    %v486 = vstv %s485
    %v487 = vadd.f32 %v481, %v486
    %v488 = vadd.f32 %v482, %v486
    %v489 = vadd.f32 %v483, %v486
    %v490 = vadd.f32 %v484, %v486
    %v491 = vmul.f32 %v487, 0.1
    %v492 = vmul.f32 %v488, 0.1
    %v493 = vmul.f32 %v489, 0.1
    %v494 = vmul.f32 %v490, 0.1
    %v495 = vmax.f32 %v487, %v491
    %v496 = vmax.f32 %v488, %v492
    %v497 = vmax.f32 %v489, %v493
    %v498 = vmax.f32 %v490, %v494
    %s499 = sld [smem:[#allocation13 + $0x3]]
    %v500 = vstv %s499
    %v501 = vadd.f32 %v190, %v500
    %v502 = vadd.f32 %v193, %v500
    %504 = vset.pattern.permute.xlu0 3
    %505 = vperm.xlu0 %504, %v501
    %v506 = vpop.permute.xlu0 %505
    %509 = vset.pattern.permute.xlu0 3
    %510 = vperm.xlu0 %509, %v502
    %v511 = vpop.permute.xlu0 %510
    %v513 = vadd.f32 %v495, %v506
    %v514 = vadd.f32 %v496, %v506
    %v515 = vadd.f32 %v497, %v511
    %v516 = vadd.f32 %v498, %v511
    %s517 = sld [smem:[#allocation14 + $0x9]]
    %v518 = vstv %s517
    %v519 = vmul.f32 %v518, %v513
    %v520 = vmul.f32 %v518, %v514
    %v521 = vmul.f32 %v518, %v515
    %v522 = vmul.f32 %v518, %v516
    %v523 = vadd.f32 %v435, %v519
    %v524 = vadd.f32 %v436, %v520
    %v525 = vadd.f32 %v437, %v521
    %v526 = vadd.f32 %v438, %v522
    %s527 = sld [smem:[#allocation14 + $0xa]]
    %v528 = vstv %s527
    %v529 = vmul.f32 %v528, %v513
    %v530 = vmul.f32 %v528, %v514
    %v531 = vmul.f32 %v528, %v515
    %v532 = vmul.f32 %v528, %v516
    %v533 = vadd.f32 %v445, %v529
    %v534 = vadd.f32 %v446, %v530
    %v535 = vadd.f32 %v447, %v531
    %v536 = vadd.f32 %v448, %v532
    %s537 = sld [smem:[#allocation14 + $0xb]]
    %v538 = vstv %s537
    %v539 = vmul.f32 %v538, %v513
    %v540 = vmul.f32 %v538, %v514
    %v541 = vmul.f32 %v538, %v515
    %v542 = vmul.f32 %v538, %v516
    %v543 = vadd.f32 %v455, %v539
    %v544 = vadd.f32 %v456, %v540
    %v545 = vadd.f32 %v457, %v541
    %v546 = vadd.f32 %v458, %v542
    %s547 = sld [smem:[#allocation10 + $0xc]]
    %v548 = vstv %s547
    %v549 = vmul.f32 %v151, %v548
    %v550 = vmul.f32 %v152, %v548
    %v551 = vmul.f32 %v153, %v548
    %v552 = vmul.f32 %v154, %v548
    %s553 = sld [smem:[#allocation10 + $0xd]]
    %v554 = vstv %s553
    %v555 = vmul.f32 %v124, %v554
    %v556 = vmul.f32 %v125, %v554
    %v557 = vmul.f32 %v126, %v554
    %v558 = vmul.f32 %v127, %v554
    %v559 = vadd.f32 %v549, %v555
    %v560 = vadd.f32 %v550, %v556
    %v561 = vadd.f32 %v551, %v557
    %v562 = vadd.f32 %v552, %v558
    %s563 = sld [smem:[#allocation10 + $0xe]]
    %v564 = vstv %s563
    %v565 = vmul.f32 %v168, %v564
    %v566 = vmul.f32 %v169, %v564
    %v567 = vmul.f32 %v170, %v564
    %v568 = vmul.f32 %v171, %v564
    %v569 = vadd.f32 %v559, %v565
    %v570 = vadd.f32 %v560, %v566
    %v571 = vadd.f32 %v561, %v567
    %v572 = vadd.f32 %v562, %v568
    %s573 = sld [smem:[#allocation11 + $0x4]]
    %v574 = vstv %s573
    %v575 = vadd.f32 %v569, %v574
    %v576 = vadd.f32 %v570, %v574
    %v577 = vadd.f32 %v571, %v574
    %v578 = vadd.f32 %v572, %v574
    %v579 = vmul.f32 %v575, 0.1
    %v580 = vmul.f32 %v576, 0.1
    %v581 = vmul.f32 %v577, 0.1
    %v582 = vmul.f32 %v578, 0.1
    %v583 = vmax.f32 %v575, %v579
    %v584 = vmax.f32 %v576, %v580
    %v585 = vmax.f32 %v577, %v581
    %v586 = vmax.f32 %v578, %v582
    %s587 = sld [smem:[#allocation13 + $0x4]]
    %v588 = vstv %s587
    %v589 = vadd.f32 %v190, %v588
    %v590 = vadd.f32 %v193, %v588
    %592 = vset.pattern.permute.xlu0 4
    %593 = vperm.xlu0 %592, %v589
    %v594 = vpop.permute.xlu0 %593
    %597 = vset.pattern.permute.xlu0 4
    %598 = vperm.xlu0 %597, %v590
    %v599 = vpop.permute.xlu0 %598
    %v601 = vadd.f32 %v583, %v594
    %v602 = vadd.f32 %v584, %v594
    %v603 = vadd.f32 %v585, %v599
    %v604 = vadd.f32 %v586, %v599
    %s605 = sld [smem:[#allocation14 + $0xc]]
    %v606 = vstv %s605
    %v607 = vmul.f32 %v606, %v601
    %v608 = vmul.f32 %v606, %v602
    %v609 = vmul.f32 %v606, %v603
    %v610 = vmul.f32 %v606, %v604
    %v611 = vadd.f32 %v523, %v607
    %v612 = vadd.f32 %v524, %v608
    %v613 = vadd.f32 %v525, %v609
    %v614 = vadd.f32 %v526, %v610
    %s615 = sld [smem:[#allocation14 + $0xd]]
    %v616 = vstv %s615
    %v617 = vmul.f32 %v616, %v601
    %v618 = vmul.f32 %v616, %v602
    %v619 = vmul.f32 %v616, %v603
    %v620 = vmul.f32 %v616, %v604
    %v621 = vadd.f32 %v533, %v617
    %v622 = vadd.f32 %v534, %v618
    %v623 = vadd.f32 %v535, %v619
    %v624 = vadd.f32 %v536, %v620
    %s625 = sld [smem:[#allocation14 + $0xe]]
    %v626 = vstv %s625
    %v627 = vmul.f32 %v626, %v601
    %v628 = vmul.f32 %v626, %v602
    %v629 = vmul.f32 %v626, %v603
    %v630 = vmul.f32 %v626, %v604
    %v631 = vadd.f32 %v543, %v627
    %v632 = vadd.f32 %v544, %v628
    %v633 = vadd.f32 %v545, %v629
    %v634 = vadd.f32 %v546, %v630
    %s635 = sld [smem:[#allocation10 + $0xf]]
    %v636 = vstv %s635
    %v637 = vmul.f32 %v151, %v636
    %v638 = vmul.f32 %v152, %v636
    %v639 = vmul.f32 %v153, %v636
    %v640 = vmul.f32 %v154, %v636
    %s641 = sld [smem:[#allocation10 + $0x10]]
    %v642 = vstv %s641
    %v643 = vmul.f32 %v124, %v642
    %v644 = vmul.f32 %v125, %v642
    %v645 = vmul.f32 %v126, %v642
    %v646 = vmul.f32 %v127, %v642
    %v647 = vadd.f32 %v637, %v643
    %v648 = vadd.f32 %v638, %v644
    %v649 = vadd.f32 %v639, %v645
    %v650 = vadd.f32 %v640, %v646
    %s651 = sld [smem:[#allocation10 + $0x11]]
    %v652 = vstv %s651
    %v653 = vmul.f32 %v168, %v652
    %v654 = vmul.f32 %v169, %v652
    %v655 = vmul.f32 %v170, %v652
    %v656 = vmul.f32 %v171, %v652
    %v657 = vadd.f32 %v647, %v653
    %v658 = vadd.f32 %v648, %v654
    %v659 = vadd.f32 %v649, %v655
    %v660 = vadd.f32 %v650, %v656
    %s661 = sld [smem:[#allocation11 + $0x5]]
    %v662 = vstv %s661
    %v663 = vadd.f32 %v657, %v662
    %v664 = vadd.f32 %v658, %v662
    %v665 = vadd.f32 %v659, %v662
    %v666 = vadd.f32 %v660, %v662
    %v667 = vmul.f32 %v663, 0.1
    %v668 = vmul.f32 %v664, 0.1
    %v669 = vmul.f32 %v665, 0.1
    %v670 = vmul.f32 %v666, 0.1
    %v671 = vmax.f32 %v663, %v667
    %v672 = vmax.f32 %v664, %v668
    %v673 = vmax.f32 %v665, %v669
    %v674 = vmax.f32 %v666, %v670
    %s675 = sld [smem:[#allocation13 + $0x5]]
    %v676 = vstv %s675
    %v677 = vadd.f32 %v190, %v676
    %v678 = vadd.f32 %v193, %v676
    %680 = vset.pattern.permute.xlu0 5
    %681 = vperm.xlu0 %680, %v677
    %v682 = vpop.permute.xlu0 %681
    %685 = vset.pattern.permute.xlu0 5
    %686 = vperm.xlu0 %685, %v678
    %v687 = vpop.permute.xlu0 %686
    %v689 = vadd.f32 %v671, %v682
    %v690 = vadd.f32 %v672, %v682
    %v691 = vadd.f32 %v673, %v687
    %v692 = vadd.f32 %v674, %v687
    %s693 = sld [smem:[#allocation14 + $0xf]]
    %v694 = vstv %s693
    %v695 = vmul.f32 %v694, %v689
    %v696 = vmul.f32 %v694, %v690
    %v697 = vmul.f32 %v694, %v691
    %v698 = vmul.f32 %v694, %v692
    %v699 = vadd.f32 %v611, %v695
    %v700 = vadd.f32 %v612, %v696
    %v701 = vadd.f32 %v613, %v697
    %v702 = vadd.f32 %v614, %v698
    %s703 = sld [smem:[#allocation14 + $0x10]]
    %v704 = vstv %s703
    %v705 = vmul.f32 %v704, %v689
    %v706 = vmul.f32 %v704, %v690
    %v707 = vmul.f32 %v704, %v691
    %v708 = vmul.f32 %v704, %v692
    %v709 = vadd.f32 %v621, %v705
    %v710 = vadd.f32 %v622, %v706
    %v711 = vadd.f32 %v623, %v707
    %v712 = vadd.f32 %v624, %v708
    %s713 = sld [smem:[#allocation14 + $0x11]]
    %v714 = vstv %s713
    %v715 = vmul.f32 %v714, %v689
    %v716 = vmul.f32 %v714, %v690
    %v717 = vmul.f32 %v714, %v691
    %v718 = vmul.f32 %v714, %v692
    %v719 = vadd.f32 %v631, %v715
    %v720 = vadd.f32 %v632, %v716
    %v721 = vadd.f32 %v633, %v717
    %v722 = vadd.f32 %v634, %v718
    %s723 = sld [smem:[#allocation10 + $0x12]]
    %v724 = vstv %s723
    %v725 = vmul.f32 %v151, %v724
    %v726 = vmul.f32 %v152, %v724
    %v727 = vmul.f32 %v153, %v724
    %v728 = vmul.f32 %v154, %v724
    %s729 = sld [smem:[#allocation10 + $0x13]]
    %v730 = vstv %s729
    %v731 = vmul.f32 %v124, %v730
    %v732 = vmul.f32 %v125, %v730
    %v733 = vmul.f32 %v126, %v730
    %v734 = vmul.f32 %v127, %v730
    %v735 = vadd.f32 %v725, %v731
    %v736 = vadd.f32 %v726, %v732
    %v737 = vadd.f32 %v727, %v733
    %v738 = vadd.f32 %v728, %v734
    %s739 = sld [smem:[#allocation10 + $0x14]]
    %v740 = vstv %s739
    %v741 = vmul.f32 %v168, %v740
    %v742 = vmul.f32 %v169, %v740
    %v743 = vmul.f32 %v170, %v740
    %v744 = vmul.f32 %v171, %v740
    %v745 = vadd.f32 %v735, %v741
    %v746 = vadd.f32 %v736, %v742
    %v747 = vadd.f32 %v737, %v743
    %v748 = vadd.f32 %v738, %v744
    %s749 = sld [smem:[#allocation11 + $0x6]]
    %v750 = vstv %s749
    %v751 = vadd.f32 %v745, %v750
    %v752 = vadd.f32 %v746, %v750
    %v753 = vadd.f32 %v747, %v750
    %v754 = vadd.f32 %v748, %v750
    %v755 = vmul.f32 %v751, 0.1
    %v756 = vmul.f32 %v752, 0.1
    %v757 = vmul.f32 %v753, 0.1
    %v758 = vmul.f32 %v754, 0.1
    %v759 = vmax.f32 %v751, %v755
    %v760 = vmax.f32 %v752, %v756
    %v761 = vmax.f32 %v753, %v757
    %v762 = vmax.f32 %v754, %v758
    %s763 = sld [smem:[#allocation13 + $0x6]]
    %v764 = vstv %s763
    %v765 = vadd.f32 %v190, %v764
    %v766 = vadd.f32 %v193, %v764
    %768 = vset.pattern.permute.xlu0 6
    %769 = vperm.xlu0 %768, %v765
    %v770 = vpop.permute.xlu0 %769
    %773 = vset.pattern.permute.xlu0 6
    %774 = vperm.xlu0 %773, %v766
    %v775 = vpop.permute.xlu0 %774
    %v777 = vadd.f32 %v759, %v770
    %v778 = vadd.f32 %v760, %v770
    %v779 = vadd.f32 %v761, %v775
    %v780 = vadd.f32 %v762, %v775
    %s781 = sld [smem:[#allocation14 + $0x12]]
    %v782 = vstv %s781
    %v783 = vmul.f32 %v782, %v777
    %v784 = vmul.f32 %v782, %v778
    %v785 = vmul.f32 %v782, %v779
    %v786 = vmul.f32 %v782, %v780
    %v787 = vadd.f32 %v699, %v783
    %v788 = vadd.f32 %v700, %v784
    %v789 = vadd.f32 %v701, %v785
    %v790 = vadd.f32 %v702, %v786
    %s791 = sld [smem:[#allocation14 + $0x13]]
    %v792 = vstv %s791
    %v793 = vmul.f32 %v792, %v777
    %v794 = vmul.f32 %v792, %v778
    %v795 = vmul.f32 %v792, %v779
    %v796 = vmul.f32 %v792, %v780
    %v797 = vadd.f32 %v709, %v793
    %v798 = vadd.f32 %v710, %v794
    %v799 = vadd.f32 %v711, %v795
    %v800 = vadd.f32 %v712, %v796
    %s801 = sld [smem:[#allocation14 + $0x14]]
    %v802 = vstv %s801
    %v803 = vmul.f32 %v802, %v777
    %v804 = vmul.f32 %v802, %v778
    %v805 = vmul.f32 %v802, %v779
    %v806 = vmul.f32 %v802, %v780
    %v807 = vadd.f32 %v719, %v803
    %v808 = vadd.f32 %v720, %v804
    %v809 = vadd.f32 %v721, %v805
    %v810 = vadd.f32 %v722, %v806
    %s811 = sld [smem:[#allocation10 + $0x15]]
    %v812 = vstv %s811
    %v813 = vmul.f32 %v151, %v812
    %v814 = vmul.f32 %v152, %v812
    %v815 = vmul.f32 %v153, %v812
    %v816 = vmul.f32 %v154, %v812
    %s817 = sld [smem:[#allocation10 + $0x16]]
    %v818 = vstv %s817
    %v819 = vmul.f32 %v124, %v818
    %v820 = vmul.f32 %v125, %v818
    %v821 = vmul.f32 %v126, %v818
    %v822 = vmul.f32 %v127, %v818
    %v823 = vadd.f32 %v813, %v819
    %v824 = vadd.f32 %v814, %v820
    %v825 = vadd.f32 %v815, %v821
    %v826 = vadd.f32 %v816, %v822
    %s827 = sld [smem:[#allocation10 + $0x17]]
    %v828 = vstv %s827
    %v829 = vmul.f32 %v168, %v828
    %v830 = vmul.f32 %v169, %v828
    %v831 = vmul.f32 %v170, %v828
    %v832 = vmul.f32 %v171, %v828
    %v833 = vadd.f32 %v823, %v829
    %v834 = vadd.f32 %v824, %v830
    %v835 = vadd.f32 %v825, %v831
    %v836 = vadd.f32 %v826, %v832
    %s837 = sld [smem:[#allocation11 + $0x7]]
    %v838 = vstv %s837
    %v839 = vadd.f32 %v833, %v838
    %v840 = vadd.f32 %v834, %v838
    %v841 = vadd.f32 %v835, %v838
    %v842 = vadd.f32 %v836, %v838
    %v843 = vmul.f32 %v839, 0.1
    %v844 = vmul.f32 %v840, 0.1
    %v845 = vmul.f32 %v841, 0.1
    %v846 = vmul.f32 %v842, 0.1
    %v847 = vmax.f32 %v839, %v843
    %v848 = vmax.f32 %v840, %v844
    %v849 = vmax.f32 %v841, %v845
    %v850 = vmax.f32 %v842, %v846
    %s851 = sld [smem:[#allocation13 + $0x7]]
    %v852 = vstv %s851
    %v853 = vadd.f32 %v190, %v852
    %v854 = vadd.f32 %v193, %v852
    %856 = vset.pattern.permute.xlu0 7
    %857 = vperm.xlu0 %856, %v853
    %v858 = vpop.permute.xlu0 %857
    %861 = vset.pattern.permute.xlu0 7
    %862 = vperm.xlu0 %861, %v854
    %v863 = vpop.permute.xlu0 %862
    %v865 = vadd.f32 %v847, %v858
    %v866 = vadd.f32 %v848, %v858
    %v867 = vadd.f32 %v849, %v863
    %v868 = vadd.f32 %v850, %v863
    %s869 = sld [smem:[#allocation14 + $0x15]]
    %v870 = vstv %s869
    %v871 = vmul.f32 %v870, %v865
    %v872 = vmul.f32 %v870, %v866
    %v873 = vmul.f32 %v870, %v867
    %v874 = vmul.f32 %v870, %v868
    %v875 = vadd.f32 %v787, %v871
    %v876 = vadd.f32 %v788, %v872
    %v877 = vadd.f32 %v789, %v873
    %v878 = vadd.f32 %v790, %v874
    %s879 = sld [smem:[#allocation14 + $0x16]]
    %v880 = vstv %s879
    %v881 = vmul.f32 %v880, %v865
    %v882 = vmul.f32 %v880, %v866
    %v883 = vmul.f32 %v880, %v867
    %v884 = vmul.f32 %v880, %v868
    %v885 = vadd.f32 %v797, %v881
    %v886 = vadd.f32 %v798, %v882
    %v887 = vadd.f32 %v799, %v883
    %v888 = vadd.f32 %v800, %v884
    %s889 = sld [smem:[#allocation14 + $0x17]]
    %v890 = vstv %s889
    %v891 = vmul.f32 %v890, %v865
    %v892 = vmul.f32 %v890, %v866
    %v893 = vmul.f32 %v890, %v867
    %v894 = vmul.f32 %v890, %v868
    %v895 = vadd.f32 %v807, %v891
    %v896 = vadd.f32 %v808, %v892
    %v897 = vadd.f32 %v809, %v893
    %v898 = vadd.f32 %v810, %v894
    %899 = vrot.lane.b32.xlu0 %v875, 1
    %v900 = vpop.permute.xlu0 %899
    %901 = vrot.lane.b32.xlu0 %v877, 1
    %v902 = vpop.permute.xlu0 %901
    %903 = vrot.lane.b32.xlu0 %v876, 1
    %v904 = vpop.permute.xlu0 %903
    %905 = vrot.lane.b32.xlu0 %v878, 1
    %v906 = vpop.permute.xlu0 %905
    %v907 = vsel %vm146, %v900, %v904
    %v908 = vsel %vm146, %v902, %v906
    %v909 = vsel %vm146, %v904, %v900
    %v910 = vsel %vm146, %v906, %v902
    %v911 = vsel %vm134, %v909, 0.0
    %v912 = vsel %vm135, %v907, 0.0
    %v913 = vsel %vm134, %v910, 0.0
    %v914 = vsel %vm135, %v908, 0.0
    %v915 = vadd.f32 %v885, %v911
    %v916 = vadd.f32 %v886, %v912
    %v917 = vadd.f32 %v887, %v913
    %v918 = vadd.f32 %v888, %v914
    %919 = vrot.lane.b32.xlu0 %v895, 127
    %v920 = vpop.permute.xlu0 %919
    %921 = vrot.lane.b32.xlu0 %v897, 127
    %v922 = vpop.permute.xlu0 %921
    %923 = vrot.lane.b32.xlu0 %v896, 127
    %v924 = vpop.permute.xlu0 %923
    %925 = vrot.lane.b32.xlu0 %v898, 127
    %v926 = vpop.permute.xlu0 %925
    %v927 = vsel %vm163, %v920, %v924
    %v928 = vsel %vm163, %v922, %v926
    %v929 = vsel %vm163, %v924, %v920
    %v930 = vsel %vm163, %v926, %v922
    %v931 = vsel %vm136, %v927, 0.0
    %v932 = vsel %vm137, %v929, 0.0
    %v933 = vsel %vm136, %v928, 0.0
    %v934 = vsel %vm137, %v930, 0.0
    %v935 = vadd.f32 %v915, %v931
    %v936 = vadd.f32 %v916, %v932
    %v937 = vadd.f32 %v917, %v933
    %v938 = vadd.f32 %v918, %v934
    %s939 = sld [smem:[#allocation2]]
    %v940 = vstv %s939
    %v941 = vadd.f32 %v935, %v940
    %v942 = vadd.f32 %v936, %v940
    %v943 = vadd.f32 %v937, %v940
    %v944 = vadd.f32 %v938, %v940
    %945 = vst [vmem:[#allocation16] sm:$0xff] %v941
    %946 = vst [vmem:[#allocation16 + $0x8] sm:$0xff] %v942
    %947 = vst [vmem:[#allocation16 + $0x10] sm:$0xff] %v943
    %948 = vst [vmem:[#allocation16 + $0x18] sm:$0xff] %v944
    // Predicated region
    $region62: #{tpu_custom_call.1} parent=1 // pred_check
      _
    $region63: #{tpu_custom_call.1} parent=1 // pred_check_branch
      %950 = sbr.rel (0) target = $region65
    $region64: #{tpu_custom_call.1} parent=1 // pred_region
      %952 = vsyncadd [#allocation5], 0
      %s953 = sshll.u32 [#allocation16], 4
      %s954 = int_to_ptr.vmem [resolvable:$true] %s953
      %s955 = sshll.u32 %s8, 4
      %s956 = int_to_ptr.hbm [resolvable:$true] %s955
      %961 = dma.vmem_to_hbm [thread:$0]  %s954, 512, %s956, [#allocation5], 256, 256, 16
    $region65: #{tpu_custom_call.1} parent=1 // pred_fallthru
      _
    // Predicated region
    $region66: #{tpu_custom_call.1} parent=1 // pred_check
      _
    $region67: #{tpu_custom_call.1} parent=1 // pred_check_branch
      %963 = sbr.rel (0) target = $region69
    $region68: #{tpu_custom_call.1} parent=1 // pred_region
      %965 = dma.done [#allocation5], 512
    $region69: #{tpu_custom_call.1} parent=1 // pred_fallthru
      _
    %966 = vsyncpa [#allocation4], 1
    %967 = vsyncpa [#allocation8], 1
    %968 = vsyncpa [#allocation5], 1
    %969 = vsyncpa [#allocation6], 1
    %970 = vsyncpa [#allocation12], 1
    %971 = vsyncpa [#allocation15], 1

</llo_original>
